<compile_context>
chip_gen: v6e
topology: v6e:2x2x1
jax: 0.10.0
libtpu: 0.0.40
codegen_flags: <defaults>
</compile_context>

<pallas_src>
import functools

import jax
import jax.numpy as jnp
from jax.experimental import pallas as pl
from jax.experimental.pallas import tpu as pltpu

_OUT_LANES = 8  # lanes written by the kernel; only lane 0 is the real output


def _round_up(n, m):
    return ((n + m - 1) // m) * m


def _supports_bf16_eup():
    """bf16 transcendentals only pay off on v6e/v7x-class chips (v5e EUP is f32-only)."""
    try:
        kind = jax.devices()[0].device_kind.lower()
    except Exception:
        return False
    return not any(tag in kind for tag in ("v2", "v3", "v4", "v5"))


def _elu(x, bf16_exp):
    # ELU, alpha=1.0 (PyTorch default). exp on min(x,0) avoids overflow for large
    # positive pre-activations. Optionally run the exp in bf16 (EUP fast path).
    xn = jnp.minimum(x, 0.0)
    if bf16_exp:
        e = jnp.exp(xn.astype(jnp.bfloat16)).astype(jnp.float32)
    else:
        e = jnp.exp(xn)
    return jnp.where(x > 0, x, e - 1.0)


def _make_mlp_kernel(bf16_exp):
    def kernel(x_ref, w1, b1, w2, b2, w3, b3, w4, b4, w5, b5, w6, b6, o_ref):
        def layer(h, w_ref, b_ref, activate):
            w = w_ref[...]
            # Cast activations to the weight dtype (bf16 fast path or f32);
            # always accumulate in f32 on the MXU.
            y = jnp.dot(h.astype(w.dtype), w, preferred_element_type=jnp.float32)
            y = y + b_ref[...]
            return _elu(y, bf16_exp) if activate else y

        h = x_ref[...]
        h = layer(h, w1, b1, True)
        h = layer(h, w2, b2, True)
        h = layer(h, w3, b3, True)
        h = layer(h, w4, b4, True)
        h = layer(h, w5, b5, True)
        h = layer(h, w6, b6, False)
        # Only 1 real output lane; store a narrow 8-lane slab to cut HBM writeback.
        o_ref[...] = h[:, :_OUT_LANES]

    return kernel


def init_params(key, input_dim):
    """Deterministic init mimicking torch.nn.Linear defaults.

    Weights stored as (in_features, out_features) for x @ W + b.
    """
    dims = [(input_dim, 200), (200, 200), (200, 200),
            (200, 100), (100, 100), (100, 1)]
    params = []
    for din, dout in dims:
        key, kw, kb = jax.random.split(key, 3)
        bound = 1.0 / jnp.sqrt(jnp.float32(din))
        w = jax.random.uniform(kw, (din, dout), jnp.float32, -bound, bound)
        b = jax.random.uniform(kb, (dout,), jnp.float32, -bound, bound)
        params.append((w, b))
    return params


@functools.partial(jax.jit, static_argnames=("tile_b", "use_bf16", "elu_bf16"))
def _forward_impl(x, params, tile_b, use_bf16, elu_bf16):
    B, D = x.shape
    x_dtype = jnp.bfloat16 if use_bf16 else jnp.float32
    w_dtype = jnp.bfloat16 if use_bf16 else jnp.float32
    itemsize = 2 if use_bf16 else 4

    align = 16 if use_bf16 else 8        # batch (sublane) alignment of the x block
    D_pad = _round_up(D, 16)             # MXU K-dim alignment (covers bf16 packing)

    # --- adaptive batch tiling ---------------------------------------------
    B_a = _round_up(B, align)
    n_steps = pl.cdiv(B_a, tile_b)
    if n_steps == 1 and B_a >= 512:
        n_steps = 2                      # give v7x megacore >=2 steps to shard
    if n_steps > 1 and n_steps % 2 == 1:
        n_steps += 1                     # even step count balances 2 TensorCores
    tb = _round_up(pl.cdiv(B_a, n_steps), align)
    B_p = n_steps * tb

    # Skip the host-side pad pass entirely in the aligned case.
    if B_p == B and D_pad == D:
        x_p = x.astype(x_dtype)
    else:
        x_p = jnp.zeros((B_p, D_pad), x_dtype).at[:B, :D].set(x.astype(x_dtype))

    # Pad hidden feature dims to 128 lanes (zeros; ELU(0)=0 so padded lanes stay 0).
    # First-layer K stays at the (16-aligned) real input width — no 128 lane pad.
    flat = []
    padded_dims = []
    for idx, (w, b) in enumerate(params):
        din, dout = w.shape
        din_p = D_pad if idx == 0 else _round_up(din, 128)
        dout_p = _round_up(dout, 128)
        wp = jnp.zeros((din_p, dout_p), jnp.float32).at[:din, :dout].set(w)
        bp = jnp.zeros((1, dout_p), jnp.float32).at[0, :dout].set(b)
        flat.extend([wp.astype(w_dtype), bp])
        padded_dims.append((din_p, dout_p))

    in_specs = [pl.BlockSpec((tb, D_pad), lambda i: (i, 0))]
    for arr in flat:
        # Constant index_map: weights/biases loaded once, resident across steps.
        in_specs.append(pl.BlockSpec(arr.shape, lambda i: (0, 0)))

    # Advisory cost estimate (scheduler hint).
    flops = 0
    transcendentals = 0
    bytes_accessed = B_p * D_pad * itemsize + B_p * _OUT_LANES * 4
    for li, (din_p, dout_p) in enumerate(padded_dims):
        flops += 2 * B_p * din_p * dout_p
        bytes_accessed += din_p * dout_p * itemsize + dout_p * 4
        if li < len(padded_dims) - 1:
            transcendentals += B_p * dout_p   # one exp per hidden element (ELU)

    out = pl.pallas_call(
        _make_mlp_kernel(elu_bf16),
        out_shape=jax.ShapeDtypeStruct((B_p, _OUT_LANES), jnp.float32),
        grid_spec=pltpu.PrefetchScalarGridSpec(
            num_scalar_prefetch=0,
            grid=(n_steps,),
            in_specs=in_specs,
            out_specs=pl.BlockSpec((tb, _OUT_LANES), lambda i: (i, 0)),
        ),
        compiler_params=pltpu.CompilerParams(
            dimension_semantics=("parallel",)),
        cost_estimate=pl.CostEstimate(
            flops=flops,
            transcendentals=transcendentals,
            bytes_accessed=bytes_accessed),
    )(x_p, *flat)

    return out[:B, :1]


def direct_learner_forward(x, params, tile_b=1024, use_bf16=True, elu_bf16=None):
    """x: (B, input_dim) float32 -> (B, 1) float32 (same as DirectLearner.forward)."""
    if elu_bf16 is None:
        elu_bf16 = use_bf16 and _supports_bf16_eup()
    return _forward_impl(x, params, tile_b, use_bf16, bool(elu_bf16))


def _reference_forward(x, params, use_bf16=False, elu_bf16=False):
    h = x.astype(jnp.bfloat16) if use_bf16 else x
    last = len(params) - 1
    for idx, (w, b) in enumerate(params):
        wd = w.astype(jnp.bfloat16) if use_bf16 else w
        y = jnp.dot(h.astype(wd.dtype), wd, preferred_element_type=jnp.float32) + b
        if idx < last:
            xn = jnp.minimum(y, 0.0)
            e = (jnp.exp(xn.astype(jnp.bfloat16)).astype(jnp.float32)
                 if elu_bf16 else jnp.exp(xn))
            h = jnp.where(y > 0, y, e - 1.0)
        else:
            h = y
    return h


if __name__ == "__main__":
    key = jax.random.PRNGKey(0)
    k_param, k_x, k_x2 = jax.random.split(key, 3)

    input_dim = 32
    batch = 8

    params = init_params(k_param, input_dim)
    x = jax.random.normal(k_x, (batch, input_dim), jnp.float32)

    # --- exact path (f32 matmuls + f32 ELU): tight check vs f32 reference ---
    y_f32 = jax.block_until_ready(
        direct_learner_forward(x, params, use_bf16=False, elu_bf16=False))
    ref_f32 = _reference_forward(x, params)
    assert y_f32.shape == (batch, 1), y_f32.shape
    assert jnp.allclose(y_f32, ref_f32, atol=1e-4, rtol=1e-4), (
        float(jnp.max(jnp.abs(y_f32 - ref_f32))))

    # --- fast path (bf16 matmul operands, f32 accumulation; bf16 exp on v6e/v7x) ---
    elu_bf16 = _supports_bf16_eup()
    y_bf16 = jax.block_until_ready(direct_learner_forward(x, params, use_bf16=True))
    ref_bf16 = _reference_forward(x, params, use_bf16=True, elu_bf16=elu_bf16)
    tol = 3e-2 if elu_bf16 else 2e-3
    assert jnp.allclose(y_bf16, ref_bf16, atol=tol, rtol=tol), (
        float(jnp.max(jnp.abs(y_bf16 - ref_bf16))))
    assert jnp.allclose(y_bf16, ref_f32, atol=1e-1, rtol=1e-1), (
        float(jnp.max(jnp.abs(y_bf16 - ref_f32))))

    # --- larger batch: exercises multi-step grid + adaptive batch tiling (f32) ---
    batch2 = 200
    x2 = jax.random.normal(k_x2, (batch2, input_dim), jnp.float32)
    y2 = jax.block_until_ready(
        direct_learner_forward(x2, params, tile_b=64, use_bf16=False, elu_bf16=False))
    ref2 = _reference_forward(x2, params)
    assert y2.shape == (batch2, 1), y2.shape
    assert jnp.allclose(y2, ref2, atol=1e-4, rtol=1e-4), (
        float(jnp.max(jnp.abs(y2 - ref2))))

    # bf16 fast path on the multi-step grid as well (loose check vs f32 reference).
    y2b = jax.block_until_ready(
        direct_learner_forward(x2, params, tile_b=64, use_bf16=True))
    assert y2b.shape == (batch2, 1), y2b.shape
    assert jnp.allclose(y2b, ref2, atol=1e-1, rtol=1e-1), (
        float(jnp.max(jnp.abs(y2b - ref2))))

    print("KERNEL_OK")
</pallas_src>

<mosaic_0001>
module attributes {stable_mosaic.version = 11 : i64} {
  func.func @kernel(%arg0: i32, %arg1: memref<8x32xf32, #tpu.memory_space<vmem>>, %arg2: memref<32x256xf32, #tpu.memory_space<vmem>>, %arg3: memref<1x256xf32, #tpu.memory_space<vmem>>, %arg4: memref<256x256xf32, #tpu.memory_space<vmem>>, %arg5: memref<1x256xf32, #tpu.memory_space<vmem>>, %arg6: memref<256x256xf32, #tpu.memory_space<vmem>>, %arg7: memref<1x256xf32, #tpu.memory_space<vmem>>, %arg8: memref<256x128xf32, #tpu.memory_space<vmem>>, %arg9: memref<1x128xf32, #tpu.memory_space<vmem>>, %arg10: memref<128x128xf32, #tpu.memory_space<vmem>>, %arg11: memref<1x128xf32, #tpu.memory_space<vmem>>, %arg12: memref<128x128xf32, #tpu.memory_space<vmem>>, %arg13: memref<1x128xf32, #tpu.memory_space<vmem>>, %arg14: memref<8x8xf32, #tpu.memory_space<vmem>>) attributes {dimension_semantics = [#tpu.dimension_semantics<parallel>], iteration_bounds = array<i64: 1>, scalar_prefetch = 0 : i64, scratch_operands = 0 : i64, tpu.core_type = #tpu.core_type<tc>, window_params = [{transform_indices = @transform_0, window_bounds = array<i64: 8, 32>}, {pipeline_mode = #tpu.pipeline_mode<synchronous>, transform_indices = @transform_1, window_bounds = array<i64: 32, 256>}, {pipeline_mode = #tpu.pipeline_mode<synchronous>, transform_indices = @transform_2, window_bounds = array<i64: 1, 256>}, {pipeline_mode = #tpu.pipeline_mode<synchronous>, transform_indices = @transform_3, window_bounds = array<i64: 256, 256>}, {pipeline_mode = #tpu.pipeline_mode<synchronous>, transform_indices = @transform_4, window_bounds = array<i64: 1, 256>}, {pipeline_mode = #tpu.pipeline_mode<synchronous>, transform_indices = @transform_5, window_bounds = array<i64: 256, 256>}, {pipeline_mode = #tpu.pipeline_mode<synchronous>, transform_indices = @transform_6, window_bounds = array<i64: 1, 256>}, {pipeline_mode = #tpu.pipeline_mode<synchronous>, transform_indices = @transform_7, window_bounds = array<i64: 256, 128>}, {pipeline_mode = #tpu.pipeline_mode<synchronous>, transform_indices = @transform_8, window_bounds = array<i64: 1, 128>}, {pipeline_mode = #tpu.pipeline_mode<synchronous>, transform_indices = @transform_9, window_bounds = array<i64: 128, 128>}, {pipeline_mode = #tpu.pipeline_mode<synchronous>, transform_indices = @transform_10, window_bounds = array<i64: 1, 128>}, {pipeline_mode = #tpu.pipeline_mode<synchronous>, transform_indices = @transform_11, window_bounds = array<i64: 128, 128>}, {pipeline_mode = #tpu.pipeline_mode<synchronous>, transform_indices = @transform_12, window_bounds = array<i64: 1, 128>}, {transform_indices = @transform_13, window_bounds = array<i64: 8, 8>}]} {
    %c0 = arith.constant 0 : index
    %c0_0 = arith.constant 0 : index
    %0 = vector.load %arg1[%c0, %c0_0] : memref<8x32xf32, #tpu.memory_space<vmem>>, vector<8x32xf32>
    %c0_1 = arith.constant 0 : index
    %c0_2 = arith.constant 0 : index
    %1 = vector.load %arg2[%c0_1, %c0_2] : memref<32x256xf32, #tpu.memory_space<vmem>>, vector<32x256xf32>
    %cst = arith.constant dense<0.000000e+00> : vector<8x256xf32>
    %2 = tpu.matmul %0, %1, %cst {dimension_numbers = #tpu.dot_dimension_numbers<[1], [0], [0], [1], [0, 0, 1, 1], [], []>} : vector<8x32xf32>, vector<32x256xf32>, vector<8x256xf32> -> vector<8x256xf32>
    %c0_3 = arith.constant 0 : index
    %c0_4 = arith.constant 0 : index
    %3 = vector.load %arg3[%c0_3, %c0_4] : memref<1x256xf32, #tpu.memory_space<vmem>>, vector<1x256xf32>
    %4 = vector.broadcast %3 : vector<1x256xf32> to vector<8x256xf32>
    %5 = arith.addf %2, %4 : vector<8x256xf32>
    %cst_5 = arith.constant 0.000000e+00 : f32
    %6 = vector.broadcast %cst_5 : f32 to vector<8x256xf32>
    %7 = arith.minimumf %5, %6 : vector<8x256xf32>
    %8 = math.exp %7 : vector<8x256xf32>
    %cst_6 = arith.constant 0.000000e+00 : f32
    %9 = vector.broadcast %cst_6 : f32 to vector<8x256xf32>
    %10 = arith.cmpf ogt, %5, %9 : vector<8x256xf32>
    %cst_7 = arith.constant 1.000000e+00 : f32
    %11 = vector.broadcast %cst_7 : f32 to vector<8x256xf32>
    %12 = arith.subf %8, %11 : vector<8x256xf32>
    %13 = arith.select %10, %5, %12 : vector<8x256xi1>, vector<8x256xf32>
    %c0_8 = arith.constant 0 : index
    %c0_9 = arith.constant 0 : index
    %14 = vector.load %arg4[%c0_8, %c0_9] : memref<256x256xf32, #tpu.memory_space<vmem>>, vector<256x256xf32>
    %cst_10 = arith.constant dense<0.000000e+00> : vector<8x256xf32>
    %15 = tpu.matmul %13, %14, %cst_10 {dimension_numbers = #tpu.dot_dimension_numbers<[1], [0], [0], [1], [0, 0, 1, 1], [], []>} : vector<8x256xf32>, vector<256x256xf32>, vector<8x256xf32> -> vector<8x256xf32>
    %c0_11 = arith.constant 0 : index
    %c0_12 = arith.constant 0 : index
    %16 = vector.load %arg5[%c0_11, %c0_12] : memref<1x256xf32, #tpu.memory_space<vmem>>, vector<1x256xf32>
    %17 = vector.broadcast %16 : vector<1x256xf32> to vector<8x256xf32>
    %18 = arith.addf %15, %17 : vector<8x256xf32>
    %cst_13 = arith.constant 0.000000e+00 : f32
    %19 = vector.broadcast %cst_13 : f32 to vector<8x256xf32>
    %20 = arith.minimumf %18, %19 : vector<8x256xf32>
    %21 = math.exp %20 : vector<8x256xf32>
    %cst_14 = arith.constant 0.000000e+00 : f32
    %22 = vector.broadcast %cst_14 : f32 to vector<8x256xf32>
    %23 = arith.cmpf ogt, %18, %22 : vector<8x256xf32>
    %cst_15 = arith.constant 1.000000e+00 : f32
    %24 = vector.broadcast %cst_15 : f32 to vector<8x256xf32>
    %25 = arith.subf %21, %24 : vector<8x256xf32>
    %26 = arith.select %23, %18, %25 : vector<8x256xi1>, vector<8x256xf32>
    %c0_16 = arith.constant 0 : index
    %c0_17 = arith.constant 0 : index
    %27 = vector.load %arg6[%c0_16, %c0_17] : memref<256x256xf32, #tpu.memory_space<vmem>>, vector<256x256xf32>
    %cst_18 = arith.constant dense<0.000000e+00> : vector<8x256xf32>
    %28 = tpu.matmul %26, %27, %cst_18 {dimension_numbers = #tpu.dot_dimension_numbers<[1], [0], [0], [1], [0, 0, 1, 1], [], []>} : vector<8x256xf32>, vector<256x256xf32>, vector<8x256xf32> -> vector<8x256xf32>
    %c0_19 = arith.constant 0 : index
    %c0_20 = arith.constant 0 : index
    %29 = vector.load %arg7[%c0_19, %c0_20] : memref<1x256xf32, #tpu.memory_space<vmem>>, vector<1x256xf32>
    %30 = vector.broadcast %29 : vector<1x256xf32> to vector<8x256xf32>
    %31 = arith.addf %28, %30 : vector<8x256xf32>
    %cst_21 = arith.constant 0.000000e+00 : f32
    %32 = vector.broadcast %cst_21 : f32 to vector<8x256xf32>
    %33 = arith.minimumf %31, %32 : vector<8x256xf32>
    %34 = math.exp %33 : vector<8x256xf32>
    %cst_22 = arith.constant 0.000000e+00 : f32
    %35 = vector.broadcast %cst_22 : f32 to vector<8x256xf32>
    %36 = arith.cmpf ogt, %31, %35 : vector<8x256xf32>
    %cst_23 = arith.constant 1.000000e+00 : f32
    %37 = vector.broadcast %cst_23 : f32 to vector<8x256xf32>
    %38 = arith.subf %34, %37 : vector<8x256xf32>
    %39 = arith.select %36, %31, %38 : vector<8x256xi1>, vector<8x256xf32>
    %c0_24 = arith.constant 0 : index
    %c0_25 = arith.constant 0 : index
    %40 = vector.load %arg8[%c0_24, %c0_25] : memref<256x128xf32, #tpu.memory_space<vmem>>, vector<256x128xf32>
    %cst_26 = arith.constant dense<0.000000e+00> : vector<8x128xf32>
    %41 = tpu.matmul %39, %40, %cst_26 {dimension_numbers = #tpu.dot_dimension_numbers<[1], [0], [0], [1], [0, 0, 1, 1], [], []>} : vector<8x256xf32>, vector<256x128xf32>, vector<8x128xf32> -> vector<8x128xf32>
    %c0_27 = arith.constant 0 : index
    %c0_28 = arith.constant 0 : index
    %42 = vector.load %arg9[%c0_27, %c0_28] : memref<1x128xf32, #tpu.memory_space<vmem>>, vector<1x128xf32>
    %43 = vector.broadcast %42 : vector<1x128xf32> to vector<8x128xf32>
    %44 = arith.addf %41, %43 : vector<8x128xf32>
    %cst_29 = arith.constant 0.000000e+00 : f32
    %45 = vector.broadcast %cst_29 : f32 to vector<8x128xf32>
    %46 = arith.minimumf %44, %45 : vector<8x128xf32>
    %47 = math.exp %46 : vector<8x128xf32>
    %cst_30 = arith.constant 0.000000e+00 : f32
    %48 = vector.broadcast %cst_30 : f32 to vector<8x128xf32>
    %49 = arith.cmpf ogt, %44, %48 : vector<8x128xf32>
    %cst_31 = arith.constant 1.000000e+00 : f32
    %50 = vector.broadcast %cst_31 : f32 to vector<8x128xf32>
    %51 = arith.subf %47, %50 : vector<8x128xf32>
    %52 = arith.select %49, %44, %51 : vector<8x128xi1>, vector<8x128xf32>
    %c0_32 = arith.constant 0 : index
    %c0_33 = arith.constant 0 : index
    %53 = vector.load %arg10[%c0_32, %c0_33] : memref<128x128xf32, #tpu.memory_space<vmem>>, vector<128x128xf32>
    %cst_34 = arith.constant dense<0.000000e+00> : vector<8x128xf32>
    %54 = tpu.matmul %52, %53, %cst_34 {dimension_numbers = #tpu.dot_dimension_numbers<[1], [0], [0], [1], [0, 0, 1, 1], [], []>} : vector<8x128xf32>, vector<128x128xf32>, vector<8x128xf32> -> vector<8x128xf32>
    %c0_35 = arith.constant 0 : index
    %c0_36 = arith.constant 0 : index
    %55 = vector.load %arg11[%c0_35, %c0_36] : memref<1x128xf32, #tpu.memory_space<vmem>>, vector<1x128xf32>
    %56 = vector.broadcast %55 : vector<1x128xf32> to vector<8x128xf32>
    %57 = arith.addf %54, %56 : vector<8x128xf32>
    %cst_37 = arith.constant 0.000000e+00 : f32
    %58 = vector.broadcast %cst_37 : f32 to vector<8x128xf32>
    %59 = arith.minimumf %57, %58 : vector<8x128xf32>
    %60 = math.exp %59 : vector<8x128xf32>
    %cst_38 = arith.constant 0.000000e+00 : f32
    %61 = vector.broadcast %cst_38 : f32 to vector<8x128xf32>
    %62 = arith.cmpf ogt, %57, %61 : vector<8x128xf32>
    %cst_39 = arith.constant 1.000000e+00 : f32
    %63 = vector.broadcast %cst_39 : f32 to vector<8x128xf32>
    %64 = arith.subf %60, %63 : vector<8x128xf32>
    %65 = arith.select %62, %57, %64 : vector<8x128xi1>, vector<8x128xf32>
    %c0_40 = arith.constant 0 : index
    %c0_41 = arith.constant 0 : index
    %66 = vector.load %arg12[%c0_40, %c0_41] : memref<128x128xf32, #tpu.memory_space<vmem>>, vector<128x128xf32>
    %cst_42 = arith.constant dense<0.000000e+00> : vector<8x128xf32>
    %67 = tpu.matmul %65, %66, %cst_42 {dimension_numbers = #tpu.dot_dimension_numbers<[1], [0], [0], [1], [0, 0, 1, 1], [], []>} : vector<8x128xf32>, vector<128x128xf32>, vector<8x128xf32> -> vector<8x128xf32>
    %c0_43 = arith.constant 0 : index
    %c0_44 = arith.constant 0 : index
    %68 = vector.load %arg13[%c0_43, %c0_44] : memref<1x128xf32, #tpu.memory_space<vmem>>, vector<1x128xf32>
    %69 = vector.broadcast %68 : vector<1x128xf32> to vector<8x128xf32>
    %70 = arith.addf %67, %69 : vector<8x128xf32>
    %71 = vector.extract_strided_slice %70 {offsets = [0, 0], sizes = [8, 8], strides = [1, 1]} : vector<8x128xf32> to vector<8x8xf32>
    %c0_45 = arith.constant 0 : index
    %c0_46 = arith.constant 0 : index
    %72 = vector.load %arg14[%c0_45, %c0_46] : memref<8x8xf32, #tpu.memory_space<vmem>>, vector<8x8xf32>
    tpu.vector_store %arg14[%c0_45, %c0_46], %71 {strides = array<i32>} : memref<8x8xf32, #tpu.memory_space<vmem>>, vector<8x8xf32>,
    return
  }
  func.func @transform_0(%arg0: i32) -> (i32, i32) {
    %c0_i32 = arith.constant 0 : i32
    %c0_i32_0 = arith.constant 0 : i32
    return %arg0, %c0_i32 : i32, i32
  }
  func.func @transform_1(%arg0: i32) -> (i32, i32) {
    %c0_i32 = arith.constant 0 : i32
    %c0_i32_0 = arith.constant 0 : i32
    %c0_i32_1 = arith.constant 0 : i32
    return %c0_i32, %c0_i32_0 : i32, i32
  }
  func.func @transform_2(%arg0: i32) -> (i32, i32) {
    %c0_i32 = arith.constant 0 : i32
    %c0_i32_0 = arith.constant 0 : i32
    %c0_i32_1 = arith.constant 0 : i32
    return %c0_i32, %c0_i32_0 : i32, i32
  }
  func.func @transform_3(%arg0: i32) -> (i32, i32) {
    %c0_i32 = arith.constant 0 : i32
    %c0_i32_0 = arith.constant 0 : i32
    %c0_i32_1 = arith.constant 0 : i32
    return %c0_i32, %c0_i32_0 : i32, i32
  }
  func.func @transform_4(%arg0: i32) -> (i32, i32) {
    %c0_i32 = arith.constant 0 : i32
    %c0_i32_0 = arith.constant 0 : i32
    %c0_i32_1 = arith.constant 0 : i32
    return %c0_i32, %c0_i32_0 : i32, i32
  }
  func.func @transform_5(%arg0: i32) -> (i32, i32) {
    %c0_i32 = arith.constant 0 : i32
    %c0_i32_0 = arith.constant 0 : i32
    %c0_i32_1 = arith.constant 0 : i32
    return %c0_i32, %c0_i32_0 : i32, i32
  }
  func.func @transform_6(%arg0: i32) -> (i32, i32) {
    %c0_i32 = arith.constant 0 : i32
    %c0_i32_0 = arith.constant 0 : i32
    %c0_i32_1 = arith.constant 0 : i32
    return %c0_i32, %c0_i32_0 : i32, i32
  }
  func.func @transform_7(%arg0: i32) -> (i32, i32) {
    %c0_i32 = arith.constant 0 : i32
    %c0_i32_0 = arith.constant 0 : i32
    %c0_i32_1 = arith.constant 0 : i32
    return %c0_i32, %c0_i32_0 : i32, i32
  }
  func.func @transform_8(%arg0: i32) -> (i32, i32) {
    %c0_i32 = arith.constant 0 : i32
    %c0_i32_0 = arith.constant 0 : i32
    %c0_i32_1 = arith.constant 0 : i32
    return %c0_i32, %c0_i32_0 : i32, i32
  }
  func.func @transform_9(%arg0: i32) -> (i32, i32) {
    %c0_i32 = arith.constant 0 : i32
    %c0_i32_0 = arith.constant 0 : i32
    %c0_i32_1 = arith.constant 0 : i32
    return %c0_i32, %c0_i32_0 : i32, i32
  }
  func.func @transform_10(%arg0: i32) -> (i32, i32) {
    %c0_i32 = arith.constant 0 : i32
    %c0_i32_0 = arith.constant 0 : i32
    %c0_i32_1 = arith.constant 0 : i32
    return %c0_i32, %c0_i32_0 : i32, i32
  }
  func.func @transform_11(%arg0: i32) -> (i32, i32) {
    %c0_i32 = arith.constant 0 : i32
    %c0_i32_0 = arith.constant 0 : i32
    %c0_i32_1 = arith.constant 0 : i32
    return %c0_i32, %c0_i32_0 : i32, i32
  }
  func.func @transform_12(%arg0: i32) -> (i32, i32) {
    %c0_i32 = arith.constant 0 : i32
    %c0_i32_0 = arith.constant 0 : i32
    %c0_i32_1 = arith.constant 0 : i32
    return %c0_i32, %c0_i32_0 : i32, i32
  }
  func.func @transform_13(%arg0: i32) -> (i32, i32) {
    %c0_i32 = arith.constant 0 : i32
    %c0_i32_0 = arith.constant 0 : i32
    return %arg0, %c0_i32 : i32, i32
  }
}

</mosaic_0001>

<llo_original>
// kernel: _forward_impl.1
$region0: #{_forward_impl.1}
  #allocation0 [shape = 'u32[]', space=smem, size = 0x4, offset = 0x4, fixed_abs, tag = 'smem constant byte address 0x4 - core index']
  #allocation1 [shape = 'u32[144,128]{1,0:T(1,128)}', space=vmem, size = 0x12000, scoped, tag = 'internal scratch']
  %s0 = inlined_call_operand.vmem [shape: f32[8,32], index: 0, kind: input, shape index: {}]
  %s1 = inlined_call_operand.vmem [shape: f32[32,256], index: 1, kind: input, shape index: {}]
  %s2 = inlined_call_operand.vmem [shape: f32[1,256], index: 2, kind: input, shape index: {}]
  %s3 = inlined_call_operand.vmem [shape: f32[256,256], index: 3, kind: input, shape index: {}]
  %s4 = inlined_call_operand.vmem [shape: f32[1,256], index: 4, kind: input, shape index: {}]
  %s5 = inlined_call_operand.vmem [shape: f32[256,256], index: 5, kind: input, shape index: {}]
  %s6 = inlined_call_operand.vmem [shape: f32[1,256], index: 6, kind: input, shape index: {}]
  %s7 = inlined_call_operand.vmem [shape: f32[256,128], index: 7, kind: input, shape index: {}]
  %s8 = inlined_call_operand.vmem [shape: f32[1,128], index: 8, kind: input, shape index: {}]
  %s9 = inlined_call_operand.vmem [shape: f32[128,128], index: 9, kind: input, shape index: {}]
  %s10 = inlined_call_operand.vmem [shape: f32[1,128], index: 10, kind: input, shape index: {}]
  %s11 = inlined_call_operand.vmem [shape: f32[128,128], index: 11, kind: input, shape index: {}]
  %s12 = inlined_call_operand.vmem [shape: f32[1,128], index: 12, kind: input, shape index: {}]
  %s13 = inlined_call_operand.vmem [shape: f32[8,8], index: 13, kind: output, shape index: {}]
  %s14 = sld [smem:[#allocation0]]
  $region62: #{_forward_impl.1} parent=0
    _
  %s16 = ssub.s32 1, %s14
  %s17 = scalar_select 0, %s16, %s14
  // Predicated region
  $region2: #{_forward_impl.1} parent=0 // pred_check
    _
  $region3: #{_forward_impl.1} parent=0 // pred_check_branch
    %19 = sbr.rel (0) target = $region5
  $region4: #{_forward_impl.1} parent=0 // pred_region
    _
  $region5: #{_forward_impl.1} parent=0 // pred_fallthru
    _
  // Predicated region
  $region6: #{_forward_impl.1} parent=0 // pred_check
    _
  $region7: #{_forward_impl.1} parent=0 // pred_check_branch
    %21 = sbr.rel (0) target = $region9
  $region8: #{_forward_impl.1} parent=0 // pred_region
    _
  $region9: #{_forward_impl.1} parent=0 // pred_fallthru
    _
  // Predicated region
  $region10: #{_forward_impl.1} parent=0 // pred_check
    _
  $region11: #{_forward_impl.1} parent=0 // pred_check_branch
    %23 = sbr.rel (0) target = $region13
  $region12: #{_forward_impl.1} parent=0 // pred_region
    _
  $region13: #{_forward_impl.1} parent=0 // pred_fallthru
    _
  // Predicated region
  $region14: #{_forward_impl.1} parent=0 // pred_check
    _
  $region15: #{_forward_impl.1} parent=0 // pred_check_branch
    %25 = sbr.rel (0) target = $region17
  $region16: #{_forward_impl.1} parent=0 // pred_region
    _
  $region17: #{_forward_impl.1} parent=0 // pred_fallthru
    _
  // Predicated region
  $region18: #{_forward_impl.1} parent=0 // pred_check
    _
  $region19: #{_forward_impl.1} parent=0 // pred_check_branch
    %27 = sbr.rel (0) target = $region21
  $region20: #{_forward_impl.1} parent=0 // pred_region
    _
  $region21: #{_forward_impl.1} parent=0 // pred_fallthru
    _
  // Predicated region
  $region22: #{_forward_impl.1} parent=0 // pred_check
    _
  $region23: #{_forward_impl.1} parent=0 // pred_check_branch
    %29 = sbr.rel (0) target = $region25
  $region24: #{_forward_impl.1} parent=0 // pred_region
    _
  $region25: #{_forward_impl.1} parent=0 // pred_fallthru
    _
  // Predicated region
  $region26: #{_forward_impl.1} parent=0 // pred_check
    _
  $region27: #{_forward_impl.1} parent=0 // pred_check_branch
    %31 = sbr.rel (0) target = $region29
  $region28: #{_forward_impl.1} parent=0 // pred_region
    _
  $region29: #{_forward_impl.1} parent=0 // pred_fallthru
    _
  // Predicated region
  $region30: #{_forward_impl.1} parent=0 // pred_check
    _
  $region31: #{_forward_impl.1} parent=0 // pred_check_branch
    %33 = sbr.rel (0) target = $region33
  $region32: #{_forward_impl.1} parent=0 // pred_region
    _
  $region33: #{_forward_impl.1} parent=0 // pred_fallthru
    _
  // Predicated region
  $region34: #{_forward_impl.1} parent=0 // pred_check
    _
  $region35: #{_forward_impl.1} parent=0 // pred_check_branch
    %35 = sbr.rel (0) target = $region37
  $region36: #{_forward_impl.1} parent=0 // pred_region
    _
  $region37: #{_forward_impl.1} parent=0 // pred_fallthru
    _
  // Predicated region
  $region38: #{_forward_impl.1} parent=0 // pred_check
    _
  $region39: #{_forward_impl.1} parent=0 // pred_check_branch
    %37 = sbr.rel (0) target = $region41
  $region40: #{_forward_impl.1} parent=0 // pred_region
    _
  $region41: #{_forward_impl.1} parent=0 // pred_fallthru
    _
  // Predicated region
  $region42: #{_forward_impl.1} parent=0 // pred_check
    _
  $region43: #{_forward_impl.1} parent=0 // pred_check_branch
    %39 = sbr.rel (0) target = $region45
  $region44: #{_forward_impl.1} parent=0 // pred_region
    _
  $region45: #{_forward_impl.1} parent=0 // pred_fallthru
    _
  // Predicated region
  $region46: #{_forward_impl.1} parent=0 // pred_check
    _
  $region47: #{_forward_impl.1} parent=0 // pred_check_branch
    %41 = sbr.rel (0) target = $region49
  $region48: #{_forward_impl.1} parent=0 // pred_region
    _
  $region49: #{_forward_impl.1} parent=0 // pred_fallthru
    _
  // Predicated region
  $region50: #{_forward_impl.1} parent=0 // pred_check
    _
  $region51: #{_forward_impl.1} parent=0 // pred_check_branch
    %43 = sbr.rel (0) target = $region53
  $region52: #{_forward_impl.1} parent=0 // pred_region
    _
  $region53: #{_forward_impl.1} parent=0 // pred_fallthru
    _
  %v44 = vld [vmem:[%s0] sm:$0xff]
  %v45 = vld [vmem:[%s1] sm:$0xff]
  %v46 = vld [vmem:[%s1 + $0x8] sm:$0xff]
  %v47 = vld [vmem:[%s1 + $0x10] sm:$0xff]
  %v48 = vld [vmem:[%s1 + $0x18] sm:$0xff]
  %v49 = vld [vmem:[%s1 + $0x20] sm:$0xff]
  %v50 = vld [vmem:[%s1 + $0x28] sm:$0xff]
  %v51 = vld [vmem:[%s1 + $0x30] sm:$0xff]
  %v52 = vld [vmem:[%s1 + $0x38] sm:$0xff]
  %v53 = vld [vmem:[%s2] sm:$0x3]
  %v55 = vlaneseq
  %v56 = vshrl.u32 %v55, 7
  %v57 = vsub.s32 0, %v56
  %v58 = vrot.slane %v53, %v57
  %v59 = vlaneseq
  %v60 = vshrl.u32 %v59, 7
  %v61 = vsub.s32 1, %v60
  %v62 = vrot.slane %v53, %v61
  %vm65 = vcmask 261120
  %v67 = vsel %vm65, %v44, 0
  %69 = vmatprep.subr.mxu0 0.0
  %70 = vmatpush1.msra.mxu0 0.0
  %71 = vmatprep.subr.mxu0 0.0
  %72 = vmatpush1.msra.mxu0 0.0
  %73 = vmatprep.subr.mxu0 0.0
  %74 = vmatpush1.msra.mxu0 0.0
  %75 = vmatprep.subr.mxu0 0.0
  %76 = vmatpush1.msra.mxu0 0.0
  %77 = vmatprep.subr.mxu0 0.0
  %78 = vmatpush1.msra.mxu0 0.0
  %79 = vmatprep.subr.mxu0 0.0
  %80 = vmatpush1.msra.mxu0 0.0
  %81 = vmatprep.subr.mxu0 0.0
  %82 = vmatpush1.msra.mxu0 0.0
  %83 = vmatprep.subr.mxu0 0.0
  %84 = vmatpush1.msra.mxu0 0.0
  %85 = vmatprep.subr.mxu0 0.0
  %86 = vmatpush1.msra.mxu0 0.0
  %87 = vmatprep.subr.mxu0 0.0
  %88 = vmatpush1.msra.mxu0 0.0
  %89 = vmatprep.subr.mxu0 0.0
  %90 = vmatpush1.msra.mxu0 0.0
  %91 = vmatprep.subr.mxu0 0.0
  %92 = vmatpush1.msra.mxu0 0.0
  %93 = vmatprep.subr.mxu0 %v52
  %94 = vmatpush1.msra.mxu0 %v51
  %95 = vmatprep.subr.mxu0 %v50
  %96 = vmatpush1.msra.mxu0 %v49
  %97 = vmatprep.subr.mxu0 %v48
  %98 = vmatpush1.msra.mxu0 %v47
  %99 = vmatprep.subr.mxu0 %v46
  %100 = vmatpush1.msra.mxu0 %v45
  %101 = vmatprep.subr.mxu0 0.0
  %102 = vmatpush2.msra.mxu0 0.0
  %103 = vmatprep.subr.mxu0 0.0
  %104 = vmatpush2.msra.mxu0 0.0
  %105 = vmatprep.subr.mxu0 0.0
  %106 = vmatpush2.msra.mxu0 0.0
  %107 = vmatprep.subr.mxu0 0.0
  %108 = vmatpush2.msra.mxu0 0.0
  %109 = vmatprep.subr.mxu0 0.0
  %110 = vmatpush2.msra.mxu0 0.0
  %111 = vmatprep.subr.mxu0 0.0
  %112 = vmatpush2.msra.mxu0 0.0
  %113 = vmatprep.subr.mxu0 0.0
  %114 = vmatpush2.msra.mxu0 0.0
  %115 = vmatprep.subr.mxu0 0.0
  %116 = vmatpush2.msra.mxu0 0.0
  %117 = vmatprep.subr.mxu0 0.0
  %118 = vmatpush2.msra.mxu0 0.0
  %119 = vmatprep.subr.mxu0 0.0
  %120 = vmatpush2.msra.mxu0 0.0
  %121 = vmatprep.subr.mxu0 0.0
  %122 = vmatpush2.msra.mxu0 0.0
  %123 = vmatprep.subr.mxu0 0.0
  %124 = vmatpush2.msra.mxu0 0.0
  %125 = vmatprep.subr.mxu0 0.0
  %126 = vmatpush2.msra.mxu0 0.0
  %127 = vmatprep.subr.mxu0 0.0
  %128 = vmatpush2.msra.mxu0 0.0
  %129 = vmatprep.subr.mxu0 0.0
  %130 = vmatpush2.msra.mxu0 0.0
  %131 = vmatprep.subr.mxu0 0.0
  %132 = vmatpush2.msra.mxu0 0.0
  %133 = vmatprep.mubr.f32.mxu0 0.0
  %134 = vmatmul.mubr.f32.gmra.mxu0 %v67
  %v135 = vpop.f32.mrf.mxu0
  %v136 = vadd.f32 %v58, %v135
  %v137 = vpop.f32.mrf.mxu0
  %v138 = vadd.f32 %v62, %v137
  %139 = vdwg.mxu0
  %v140 = vmin.f32 %v136, 0.0
  %v141 = vmin.f32 %v138, 0.0
  %v142 = vmul.f32 %v140, 1.442695
  %v143 = vpow.pop %v142
  %v144 = vmul.f32 %v141, 1.442695
  %v145 = vpow.pop %v144
  %vm146 = vcmp.gt.f32.partialorder %v136, 0.0
  %vm147 = vcmp.gt.f32.partialorder %v138, 0.0
  %v148 = vsub.f32 %v143, 1.0
  %v149 = vsub.f32 %v145, 1.0
  %v150 = vsel %vm146, %v136, %v148
  %v151 = vsel %vm147, %v138, %v149
  %v152 = vld [vmem:[%s3] sm:$0xff]
  %v153 = vld [vmem:[%s3 + $0x8] sm:$0xff]
  %v154 = vld [vmem:[%s3 + $0x10] sm:$0xff]
  %v155 = vld [vmem:[%s3 + $0x18] sm:$0xff]
  %v156 = vld [vmem:[%s3 + $0x20] sm:$0xff]
  %v157 = vld [vmem:[%s3 + $0x28] sm:$0xff]
  %v158 = vld [vmem:[%s3 + $0x30] sm:$0xff]
  %v159 = vld [vmem:[%s3 + $0x38] sm:$0xff]
  %v160 = vld [vmem:[%s3 + $0x40] sm:$0xff]
  %v161 = vld [vmem:[%s3 + $0x48] sm:$0xff]
  %v162 = vld [vmem:[%s3 + $0x50] sm:$0xff]
  %v163 = vld [vmem:[%s3 + $0x58] sm:$0xff]
  %v164 = vld [vmem:[%s3 + $0x60] sm:$0xff]
  %v165 = vld [vmem:[%s3 + $0x68] sm:$0xff]
  %v166 = vld [vmem:[%s3 + $0x70] sm:$0xff]
  %v167 = vld [vmem:[%s3 + $0x78] sm:$0xff]
  %v168 = vld [vmem:[%s3 + $0x80] sm:$0xff]
  %v169 = vld [vmem:[%s3 + $0x88] sm:$0xff]
  %v170 = vld [vmem:[%s3 + $0x90] sm:$0xff]
  %v171 = vld [vmem:[%s3 + $0x98] sm:$0xff]
  %v172 = vld [vmem:[%s3 + $0xa0] sm:$0xff]
  %v173 = vld [vmem:[%s3 + $0xa8] sm:$0xff]
  %v174 = vld [vmem:[%s3 + $0xb0] sm:$0xff]
  %v175 = vld [vmem:[%s3 + $0xb8] sm:$0xff]
  %v176 = vld [vmem:[%s3 + $0xc0] sm:$0xff]
  %v177 = vld [vmem:[%s3 + $0xc8] sm:$0xff]
  %v178 = vld [vmem:[%s3 + $0xd0] sm:$0xff]
  %v179 = vld [vmem:[%s3 + $0xd8] sm:$0xff]
  %v180 = vld [vmem:[%s3 + $0xe0] sm:$0xff]
  %v181 = vld [vmem:[%s3 + $0xe8] sm:$0xff]
  %v182 = vld [vmem:[%s3 + $0xf0] sm:$0xff]
  %v183 = vld [vmem:[%s3 + $0xf8] sm:$0xff]
  %v184 = vld [vmem:[%s3 + $0x100] sm:$0xff]
  %v185 = vld [vmem:[%s3 + $0x108] sm:$0xff]
  %v186 = vld [vmem:[%s3 + $0x110] sm:$0xff]
  %v187 = vld [vmem:[%s3 + $0x118] sm:$0xff]
  %v188 = vld [vmem:[%s3 + $0x120] sm:$0xff]
  %v189 = vld [vmem:[%s3 + $0x128] sm:$0xff]
  %v190 = vld [vmem:[%s3 + $0x130] sm:$0xff]
  %v191 = vld [vmem:[%s3 + $0x138] sm:$0xff]
  %v192 = vld [vmem:[%s3 + $0x140] sm:$0xff]
  %v193 = vld [vmem:[%s3 + $0x148] sm:$0xff]
  %v194 = vld [vmem:[%s3 + $0x150] sm:$0xff]
  %v195 = vld [vmem:[%s3 + $0x158] sm:$0xff]
  %v196 = vld [vmem:[%s3 + $0x160] sm:$0xff]
  %v197 = vld [vmem:[%s3 + $0x168] sm:$0xff]
  %v198 = vld [vmem:[%s3 + $0x170] sm:$0xff]
  %v199 = vld [vmem:[%s3 + $0x178] sm:$0xff]
  %v200 = vld [vmem:[%s3 + $0x180] sm:$0xff]
  %v201 = vld [vmem:[%s3 + $0x188] sm:$0xff]
  %v202 = vld [vmem:[%s3 + $0x190] sm:$0xff]
  %v203 = vld [vmem:[%s3 + $0x198] sm:$0xff]
  %v204 = vld [vmem:[%s3 + $0x1a0] sm:$0xff]
  %v205 = vld [vmem:[%s3 + $0x1a8] sm:$0xff]
  %v206 = vld [vmem:[%s3 + $0x1b0] sm:$0xff]
  %v207 = vld [vmem:[%s3 + $0x1b8] sm:$0xff]
  %v208 = vld [vmem:[%s3 + $0x1c0] sm:$0xff]
  %v209 = vld [vmem:[%s3 + $0x1c8] sm:$0xff]
  %v210 = vld [vmem:[%s3 + $0x1d0] sm:$0xff]
  %v211 = vld [vmem:[%s3 + $0x1d8] sm:$0xff]
  %v212 = vld [vmem:[%s3 + $0x1e0] sm:$0xff]
  %v213 = vld [vmem:[%s3 + $0x1e8] sm:$0xff]
  %v214 = vld [vmem:[%s3 + $0x1f0] sm:$0xff]
  %v215 = vld [vmem:[%s3 + $0x1f8] sm:$0xff]
  %v216 = vld [vmem:[%s4] sm:$0x3]
  %v218 = vlaneseq
  %v219 = vshrl.u32 %v218, 7
  %v220 = vsub.s32 0, %v219
  %v221 = vrot.slane %v216, %v220
  %v222 = vlaneseq
  %v223 = vshrl.u32 %v222, 7
  %v224 = vsub.s32 1, %v223
  %v225 = vrot.slane %v216, %v224
  %228 = vmatprep.subr.mxu0 %v183
  %229 = vmatpush1.msra.mxu0 %v182
  %230 = vmatprep.subr.mxu0 %v181
  %231 = vmatpush1.msra.mxu0 %v180
  %232 = vmatprep.subr.mxu0 %v179
  %233 = vmatpush1.msra.mxu0 %v178
  %234 = vmatprep.subr.mxu0 %v177
  %235 = vmatpush1.msra.mxu0 %v176
  %236 = vmatprep.subr.mxu0 %v175
  %237 = vmatpush1.msra.mxu0 %v174
  %238 = vmatprep.subr.mxu0 %v173
  %239 = vmatpush1.msra.mxu0 %v172
  %240 = vmatprep.subr.mxu0 %v171
  %241 = vmatpush1.msra.mxu0 %v170
  %242 = vmatprep.subr.mxu0 %v169
  %243 = vmatpush1.msra.mxu0 %v168
  %244 = vmatprep.subr.mxu0 %v167
  %245 = vmatpush1.msra.mxu0 %v166
  %246 = vmatprep.subr.mxu0 %v165
  %247 = vmatpush1.msra.mxu0 %v164
  %248 = vmatprep.subr.mxu0 %v163
  %249 = vmatpush1.msra.mxu0 %v162
  %250 = vmatprep.subr.mxu0 %v161
  %251 = vmatpush1.msra.mxu0 %v160
  %252 = vmatprep.subr.mxu0 %v159
  %253 = vmatpush1.msra.mxu0 %v158
  %254 = vmatprep.subr.mxu0 %v157
  %255 = vmatpush1.msra.mxu0 %v156
  %256 = vmatprep.subr.mxu0 %v155
  %257 = vmatpush1.msra.mxu0 %v154
  %258 = vmatprep.subr.mxu0 %v153
  %259 = vmatpush1.msra.mxu0 %v152
  %260 = vmatprep.subr.mxu0 %v215
  %261 = vmatpush2.msra.mxu0 %v214
  %262 = vmatprep.subr.mxu0 %v213
  %263 = vmatpush2.msra.mxu0 %v212
  %264 = vmatprep.subr.mxu0 %v211
  %265 = vmatpush2.msra.mxu0 %v210
  %266 = vmatprep.subr.mxu0 %v209
  %267 = vmatpush2.msra.mxu0 %v208
  %268 = vmatprep.subr.mxu0 %v207
  %269 = vmatpush2.msra.mxu0 %v206
  %270 = vmatprep.subr.mxu0 %v205
  %271 = vmatpush2.msra.mxu0 %v204
  %272 = vmatprep.subr.mxu0 %v203
  %273 = vmatpush2.msra.mxu0 %v202
  %274 = vmatprep.subr.mxu0 %v201
  %275 = vmatpush2.msra.mxu0 %v200
  %276 = vmatprep.subr.mxu0 %v199
  %277 = vmatpush2.msra.mxu0 %v198
  %278 = vmatprep.subr.mxu0 %v197
  %279 = vmatpush2.msra.mxu0 %v196
  %280 = vmatprep.subr.mxu0 %v195
  %281 = vmatpush2.msra.mxu0 %v194
  %282 = vmatprep.subr.mxu0 %v193
  %283 = vmatpush2.msra.mxu0 %v192
  %284 = vmatprep.subr.mxu0 %v191
  %285 = vmatpush2.msra.mxu0 %v190
  %286 = vmatprep.subr.mxu0 %v189
  %287 = vmatpush2.msra.mxu0 %v188
  %288 = vmatprep.subr.mxu0 %v187
  %289 = vmatpush2.msra.mxu0 %v186
  %290 = vmatprep.subr.mxu0 %v185
  %291 = vmatpush2.msra.mxu0 %v184
  %292 = vmatprep.mubr.f32.mxu0 %v151
  %293 = vmatmul.mubr.f32.gmra.mxu0 %v150
  %v294 = vpop.f32.mrf.mxu0
  %v295 = vadd.f32 %v221, %v294
  %v296 = vpop.f32.mrf.mxu0
  %v297 = vadd.f32 %v225, %v296
  %298 = vdwg.mxu0
  %v299 = vmin.f32 %v295, 0.0
  %v300 = vmin.f32 %v297, 0.0
  %v301 = vmul.f32 %v299, 1.442695
  %v302 = vpow.pop %v301
  %v303 = vmul.f32 %v300, 1.442695
  %v304 = vpow.pop %v303
  %vm305 = vcmp.gt.f32.partialorder %v295, 0.0
  %vm306 = vcmp.gt.f32.partialorder %v297, 0.0
  %v307 = vsub.f32 %v302, 1.0
  %v308 = vsub.f32 %v304, 1.0
  %v309 = vsel %vm305, %v295, %v307
  %v310 = vsel %vm306, %v297, %v308
  %v311 = vld [vmem:[%s5] sm:$0xff]
  %v312 = vld [vmem:[%s5 + $0x8] sm:$0xff]
  %v313 = vld [vmem:[%s5 + $0x10] sm:$0xff]
  %v314 = vld [vmem:[%s5 + $0x18] sm:$0xff]
  %v315 = vld [vmem:[%s5 + $0x20] sm:$0xff]
  %v316 = vld [vmem:[%s5 + $0x28] sm:$0xff]
  %v317 = vld [vmem:[%s5 + $0x30] sm:$0xff]
  %v318 = vld [vmem:[%s5 + $0x38] sm:$0xff]
  %v319 = vld [vmem:[%s5 + $0x40] sm:$0xff]
  %v320 = vld [vmem:[%s5 + $0x48] sm:$0xff]
  %v321 = vld [vmem:[%s5 + $0x50] sm:$0xff]
  %v322 = vld [vmem:[%s5 + $0x58] sm:$0xff]
  %v323 = vld [vmem:[%s5 + $0x60] sm:$0xff]
  %v324 = vld [vmem:[%s5 + $0x68] sm:$0xff]
  %v325 = vld [vmem:[%s5 + $0x70] sm:$0xff]
  %v326 = vld [vmem:[%s5 + $0x78] sm:$0xff]
  %v327 = vld [vmem:[%s5 + $0x80] sm:$0xff]
  %v328 = vld [vmem:[%s5 + $0x88] sm:$0xff]
  %v329 = vld [vmem:[%s5 + $0x90] sm:$0xff]
  %v330 = vld [vmem:[%s5 + $0x98] sm:$0xff]
  %v331 = vld [vmem:[%s5 + $0xa0] sm:$0xff]
  %v332 = vld [vmem:[%s5 + $0xa8] sm:$0xff]
  %v333 = vld [vmem:[%s5 + $0xb0] sm:$0xff]
  %v334 = vld [vmem:[%s5 + $0xb8] sm:$0xff]
  %v335 = vld [vmem:[%s5 + $0xc0] sm:$0xff]
  %v336 = vld [vmem:[%s5 + $0xc8] sm:$0xff]
  %v337 = vld [vmem:[%s5 + $0xd0] sm:$0xff]
  %v338 = vld [vmem:[%s5 + $0xd8] sm:$0xff]
  %v339 = vld [vmem:[%s5 + $0xe0] sm:$0xff]
  %v340 = vld [vmem:[%s5 + $0xe8] sm:$0xff]
  %v341 = vld [vmem:[%s5 + $0xf0] sm:$0xff]
  %v342 = vld [vmem:[%s5 + $0xf8] sm:$0xff]
  %v343 = vld [vmem:[%s5 + $0x100] sm:$0xff]
  %v344 = vld [vmem:[%s5 + $0x108] sm:$0xff]
  %v345 = vld [vmem:[%s5 + $0x110] sm:$0xff]
  %v346 = vld [vmem:[%s5 + $0x118] sm:$0xff]
  %v347 = vld [vmem:[%s5 + $0x120] sm:$0xff]
  %v348 = vld [vmem:[%s5 + $0x128] sm:$0xff]
  %v349 = vld [vmem:[%s5 + $0x130] sm:$0xff]
  %v350 = vld [vmem:[%s5 + $0x138] sm:$0xff]
  %v351 = vld [vmem:[%s5 + $0x140] sm:$0xff]
  %v352 = vld [vmem:[%s5 + $0x148] sm:$0xff]
  %v353 = vld [vmem:[%s5 + $0x150] sm:$0xff]
  %v354 = vld [vmem:[%s5 + $0x158] sm:$0xff]
  %v355 = vld [vmem:[%s5 + $0x160] sm:$0xff]
  %v356 = vld [vmem:[%s5 + $0x168] sm:$0xff]
  %v357 = vld [vmem:[%s5 + $0x170] sm:$0xff]
  %v358 = vld [vmem:[%s5 + $0x178] sm:$0xff]
  %v359 = vld [vmem:[%s5 + $0x180] sm:$0xff]
  %v360 = vld [vmem:[%s5 + $0x188] sm:$0xff]
  %v361 = vld [vmem:[%s5 + $0x190] sm:$0xff]
  %v362 = vld [vmem:[%s5 + $0x198] sm:$0xff]
  %v363 = vld [vmem:[%s5 + $0x1a0] sm:$0xff]
  %v364 = vld [vmem:[%s5 + $0x1a8] sm:$0xff]
  %v365 = vld [vmem:[%s5 + $0x1b0] sm:$0xff]
  %v366 = vld [vmem:[%s5 + $0x1b8] sm:$0xff]
  %v367 = vld [vmem:[%s5 + $0x1c0] sm:$0xff]
  %v368 = vld [vmem:[%s5 + $0x1c8] sm:$0xff]
  %v369 = vld [vmem:[%s5 + $0x1d0] sm:$0xff]
  %v370 = vld [vmem:[%s5 + $0x1d8] sm:$0xff]
  %v371 = vld [vmem:[%s5 + $0x1e0] sm:$0xff]
  %v372 = vld [vmem:[%s5 + $0x1e8] sm:$0xff]
  %v373 = vld [vmem:[%s5 + $0x1f0] sm:$0xff]
  %v374 = vld [vmem:[%s5 + $0x1f8] sm:$0xff]
  %v375 = vld [vmem:[%s6] sm:$0x3]
  %v377 = vlaneseq
  %v378 = vshrl.u32 %v377, 7
  %v379 = vsub.s32 0, %v378
  %v380 = vrot.slane %v375, %v379
  %v381 = vlaneseq
  %v382 = vshrl.u32 %v381, 7
  %v383 = vsub.s32 1, %v382
  %v384 = vrot.slane %v375, %v383
  %387 = vmatprep.subr.mxu0 %v342
  %388 = vmatpush1.msra.mxu0 %v341
  %389 = vmatprep.subr.mxu0 %v340
  %390 = vmatpush1.msra.mxu0 %v339
  %391 = vmatprep.subr.mxu0 %v338
  %392 = vmatpush1.msra.mxu0 %v337
  %393 = vmatprep.subr.mxu0 %v336
  %394 = vmatpush1.msra.mxu0 %v335
  %395 = vmatprep.subr.mxu0 %v334
  %396 = vmatpush1.msra.mxu0 %v333
  %397 = vmatprep.subr.mxu0 %v332
  %398 = vmatpush1.msra.mxu0 %v331
  %399 = vmatprep.subr.mxu0 %v330
  %400 = vmatpush1.msra.mxu0 %v329
  %401 = vmatprep.subr.mxu0 %v328
  %402 = vmatpush1.msra.mxu0 %v327
  %403 = vmatprep.subr.mxu0 %v326
  %404 = vmatpush1.msra.mxu0 %v325
  %405 = vmatprep.subr.mxu0 %v324
  %406 = vmatpush1.msra.mxu0 %v323
  %407 = vmatprep.subr.mxu0 %v322
  %408 = vmatpush1.msra.mxu0 %v321
  %409 = vmatprep.subr.mxu0 %v320
  %410 = vmatpush1.msra.mxu0 %v319
  %411 = vmatprep.subr.mxu0 %v318
  %412 = vmatpush1.msra.mxu0 %v317
  %413 = vmatprep.subr.mxu0 %v316
  %414 = vmatpush1.msra.mxu0 %v315
  %415 = vmatprep.subr.mxu0 %v314
  %416 = vmatpush1.msra.mxu0 %v313
  %417 = vmatprep.subr.mxu0 %v312
  %418 = vmatpush1.msra.mxu0 %v311
  %419 = vmatprep.subr.mxu0 %v374
  %420 = vmatpush2.msra.mxu0 %v373
  %421 = vmatprep.subr.mxu0 %v372
  %422 = vmatpush2.msra.mxu0 %v371
  %423 = vmatprep.subr.mxu0 %v370
  %424 = vmatpush2.msra.mxu0 %v369
  %425 = vmatprep.subr.mxu0 %v368
  %426 = vmatpush2.msra.mxu0 %v367
  %427 = vmatprep.subr.mxu0 %v366
  %428 = vmatpush2.msra.mxu0 %v365
  %429 = vmatprep.subr.mxu0 %v364
  %430 = vmatpush2.msra.mxu0 %v363
  %431 = vmatprep.subr.mxu0 %v362
  %432 = vmatpush2.msra.mxu0 %v361
  %433 = vmatprep.subr.mxu0 %v360
  %434 = vmatpush2.msra.mxu0 %v359
  %435 = vmatprep.subr.mxu0 %v358
  %436 = vmatpush2.msra.mxu0 %v357
  %437 = vmatprep.subr.mxu0 %v356
  %438 = vmatpush2.msra.mxu0 %v355
  %439 = vmatprep.subr.mxu0 %v354
  %440 = vmatpush2.msra.mxu0 %v353
  %441 = vmatprep.subr.mxu0 %v352
  %442 = vmatpush2.msra.mxu0 %v351
  %443 = vmatprep.subr.mxu0 %v350
  %444 = vmatpush2.msra.mxu0 %v349
  %445 = vmatprep.subr.mxu0 %v348
  %446 = vmatpush2.msra.mxu0 %v347
  %447 = vmatprep.subr.mxu0 %v346
  %448 = vmatpush2.msra.mxu0 %v345
  %449 = vmatprep.subr.mxu0 %v344
  %450 = vmatpush2.msra.mxu0 %v343
  %451 = vmatprep.mubr.f32.mxu0 %v310
  %452 = vmatmul.mubr.f32.gmra.mxu0 %v309
  %v453 = vpop.f32.mrf.mxu0
  %v454 = vadd.f32 %v380, %v453
  %v455 = vpop.f32.mrf.mxu0
  %v456 = vadd.f32 %v384, %v455
  %457 = vdwg.mxu0
  %v458 = vmin.f32 %v454, 0.0
  %v459 = vmin.f32 %v456, 0.0
  %v460 = vmul.f32 %v458, 1.442695
  %v461 = vpow.pop %v460
  %v462 = vmul.f32 %v459, 1.442695
  %v463 = vpow.pop %v462
  %vm464 = vcmp.gt.f32.partialorder %v454, 0.0
  %vm465 = vcmp.gt.f32.partialorder %v456, 0.0
  %v466 = vsub.f32 %v461, 1.0
  %v467 = vsub.f32 %v463, 1.0
  %v468 = vsel %vm464, %v454, %v466
  %v469 = vsel %vm465, %v456, %v467
  %v470 = vld [vmem:[%s7] sm:$0xff]
  %v471 = vld [vmem:[%s7 + $0x8] sm:$0xff]
  %v472 = vld [vmem:[%s7 + $0x10] sm:$0xff]
  %v473 = vld [vmem:[%s7 + $0x18] sm:$0xff]
  %v474 = vld [vmem:[%s7 + $0x20] sm:$0xff]
  %v475 = vld [vmem:[%s7 + $0x28] sm:$0xff]
  %v476 = vld [vmem:[%s7 + $0x30] sm:$0xff]
  %v477 = vld [vmem:[%s7 + $0x38] sm:$0xff]
  %v478 = vld [vmem:[%s7 + $0x40] sm:$0xff]
  %v479 = vld [vmem:[%s7 + $0x48] sm:$0xff]
  %v480 = vld [vmem:[%s7 + $0x50] sm:$0xff]
  %v481 = vld [vmem:[%s7 + $0x58] sm:$0xff]
  %v482 = vld [vmem:[%s7 + $0x60] sm:$0xff]
  %v483 = vld [vmem:[%s7 + $0x68] sm:$0xff]
  %v484 = vld [vmem:[%s7 + $0x70] sm:$0xff]
  %v485 = vld [vmem:[%s7 + $0x78] sm:$0xff]
  %v486 = vld [vmem:[%s7 + $0x80] sm:$0xff]
  %v487 = vld [vmem:[%s7 + $0x88] sm:$0xff]
  %v488 = vld [vmem:[%s7 + $0x90] sm:$0xff]
  %v489 = vld [vmem:[%s7 + $0x98] sm:$0xff]
  %v490 = vld [vmem:[%s7 + $0xa0] sm:$0xff]
  %v491 = vld [vmem:[%s7 + $0xa8] sm:$0xff]
  %v492 = vld [vmem:[%s7 + $0xb0] sm:$0xff]
  %v493 = vld [vmem:[%s7 + $0xb8] sm:$0xff]
  %v494 = vld [vmem:[%s7 + $0xc0] sm:$0xff]
  %v495 = vld [vmem:[%s7 + $0xc8] sm:$0xff]
  %v496 = vld [vmem:[%s7 + $0xd0] sm:$0xff]
  %v497 = vld [vmem:[%s7 + $0xd8] sm:$0xff]
  %v498 = vld [vmem:[%s7 + $0xe0] sm:$0xff]
  %v499 = vld [vmem:[%s7 + $0xe8] sm:$0xff]
  %v500 = vld [vmem:[%s7 + $0xf0] sm:$0xff]
  %v501 = vld [vmem:[%s7 + $0xf8] sm:$0xff]
  %v502 = vld [vmem:[%s8] sm:$0x1]
  %v504 = vlaneseq
  %v505 = vshrl.u32 %v504, 7
  %v506 = vsub.s32 0, %v505
  %v507 = vrot.slane %v502, %v506
  %509 = vmatprep.subr.mxu0 0.0
  %510 = vmatpush1.msra.mxu0 %v485
  %511 = vmatprep.subr.mxu0 0.0
  %512 = vmatpush1.msra.mxu0 %v484
  %513 = vmatprep.subr.mxu0 0.0
  %514 = vmatpush1.msra.mxu0 %v483
  %515 = vmatprep.subr.mxu0 0.0
  %516 = vmatpush1.msra.mxu0 %v482
  %517 = vmatprep.subr.mxu0 0.0
  %518 = vmatpush1.msra.mxu0 %v481
  %519 = vmatprep.subr.mxu0 0.0
  %520 = vmatpush1.msra.mxu0 %v480
  %521 = vmatprep.subr.mxu0 0.0
  %522 = vmatpush1.msra.mxu0 %v479
  %523 = vmatprep.subr.mxu0 0.0
  %524 = vmatpush1.msra.mxu0 %v478
  %525 = vmatprep.subr.mxu0 0.0
  %526 = vmatpush1.msra.mxu0 %v477
  %527 = vmatprep.subr.mxu0 0.0
  %528 = vmatpush1.msra.mxu0 %v476
  %529 = vmatprep.subr.mxu0 0.0
  %530 = vmatpush1.msra.mxu0 %v475
  %531 = vmatprep.subr.mxu0 0.0
  %532 = vmatpush1.msra.mxu0 %v474
  %533 = vmatprep.subr.mxu0 0.0
  %534 = vmatpush1.msra.mxu0 %v473
  %535 = vmatprep.subr.mxu0 0.0
  %536 = vmatpush1.msra.mxu0 %v472
  %537 = vmatprep.subr.mxu0 0.0
  %538 = vmatpush1.msra.mxu0 %v471
  %539 = vmatprep.subr.mxu0 0.0
  %540 = vmatpush1.msra.mxu0 %v470
  %541 = vmatprep.subr.mxu0 0.0
  %542 = vmatpush2.msra.mxu0 %v501
  %543 = vmatprep.subr.mxu0 0.0
  %544 = vmatpush2.msra.mxu0 %v500
  %545 = vmatprep.subr.mxu0 0.0
  %546 = vmatpush2.msra.mxu0 %v499
  %547 = vmatprep.subr.mxu0 0.0
  %548 = vmatpush2.msra.mxu0 %v498
  %549 = vmatprep.subr.mxu0 0.0
  %550 = vmatpush2.msra.mxu0 %v497
  %551 = vmatprep.subr.mxu0 0.0
  %552 = vmatpush2.msra.mxu0 %v496
  %553 = vmatprep.subr.mxu0 0.0
  %554 = vmatpush2.msra.mxu0 %v495
  %555 = vmatprep.subr.mxu0 0.0
  %556 = vmatpush2.msra.mxu0 %v494
  %557 = vmatprep.subr.mxu0 0.0
  %558 = vmatpush2.msra.mxu0 %v493
  %559 = vmatprep.subr.mxu0 0.0
  %560 = vmatpush2.msra.mxu0 %v492
  %561 = vmatprep.subr.mxu0 0.0
  %562 = vmatpush2.msra.mxu0 %v491
  %563 = vmatprep.subr.mxu0 0.0
  %564 = vmatpush2.msra.mxu0 %v490
  %565 = vmatprep.subr.mxu0 0.0
  %566 = vmatpush2.msra.mxu0 %v489
  %567 = vmatprep.subr.mxu0 0.0
  %568 = vmatpush2.msra.mxu0 %v488
  %569 = vmatprep.subr.mxu0 0.0
  %570 = vmatpush2.msra.mxu0 %v487
  %571 = vmatprep.subr.mxu0 0.0
  %572 = vmatpush2.msra.mxu0 %v486
  %573 = vmatprep.mubr.f32.mxu0 %v469
  %574 = vmatmul.mubr.f32.gmra.mxu0 %v468
  %v575 = vpop.f32.mrf.mxu0
  %v576 = vadd.f32 %v507, %v575
  %v577 = vpop.f32.mrf.mxu0
  %578 = vdwg.mxu0
  %v579 = vmin.f32 %v576, 0.0
  %v580 = vmul.f32 %v579, 1.442695
  %v581 = vpow.pop %v580
  %vm582 = vcmp.gt.f32.partialorder %v576, 0.0
  %v583 = vsub.f32 %v581, 1.0
  %v584 = vsel %vm582, %v576, %v583
  %v585 = vld [vmem:[%s9] sm:$0xff]
  %v586 = vld [vmem:[%s9 + $0x8] sm:$0xff]
  %v587 = vld [vmem:[%s9 + $0x10] sm:$0xff]
  %v588 = vld [vmem:[%s9 + $0x18] sm:$0xff]
  %v589 = vld [vmem:[%s9 + $0x20] sm:$0xff]
  %v590 = vld [vmem:[%s9 + $0x28] sm:$0xff]
  %v591 = vld [vmem:[%s9 + $0x30] sm:$0xff]
  %v592 = vld [vmem:[%s9 + $0x38] sm:$0xff]
  %v593 = vld [vmem:[%s9 + $0x40] sm:$0xff]
  %v594 = vld [vmem:[%s9 + $0x48] sm:$0xff]
  %v595 = vld [vmem:[%s9 + $0x50] sm:$0xff]
  %v596 = vld [vmem:[%s9 + $0x58] sm:$0xff]
  %v597 = vld [vmem:[%s9 + $0x60] sm:$0xff]
  %v598 = vld [vmem:[%s9 + $0x68] sm:$0xff]
  %v599 = vld [vmem:[%s9 + $0x70] sm:$0xff]
  %v600 = vld [vmem:[%s9 + $0x78] sm:$0xff]
  %v601 = vld [vmem:[%s10] sm:$0x1]
  %v603 = vlaneseq
  %v604 = vshrl.u32 %v603, 7
  %v605 = vsub.s32 0, %v604
  %v606 = vrot.slane %v601, %v605
  %608 = vmatprep.subr.mxu0 0.0
  %609 = vmatpush1.msra.mxu0 %v600
  %610 = vmatprep.subr.mxu0 0.0
  %611 = vmatpush1.msra.mxu0 %v599
  %612 = vmatprep.subr.mxu0 0.0
  %613 = vmatpush1.msra.mxu0 %v598
  %614 = vmatprep.subr.mxu0 0.0
  %615 = vmatpush1.msra.mxu0 %v597
  %616 = vmatprep.subr.mxu0 0.0
  %617 = vmatpush1.msra.mxu0 %v596
  %618 = vmatprep.subr.mxu0 0.0
  %619 = vmatpush1.msra.mxu0 %v595
  %620 = vmatprep.subr.mxu0 0.0
  %621 = vmatpush1.msra.mxu0 %v594
  %622 = vmatprep.subr.mxu0 0.0
  %623 = vmatpush1.msra.mxu0 %v593
  %624 = vmatprep.subr.mxu0 0.0
  %625 = vmatpush1.msra.mxu0 %v592
  %626 = vmatprep.subr.mxu0 0.0
  %627 = vmatpush1.msra.mxu0 %v591
  %628 = vmatprep.subr.mxu0 0.0
  %629 = vmatpush1.msra.mxu0 %v590
  %630 = vmatprep.subr.mxu0 0.0
  %631 = vmatpush1.msra.mxu0 %v589
  %632 = vmatprep.subr.mxu0 0.0
  %633 = vmatpush1.msra.mxu0 %v588
  %634 = vmatprep.subr.mxu0 0.0
  %635 = vmatpush1.msra.mxu0 %v587
  %636 = vmatprep.subr.mxu0 0.0
  %637 = vmatpush1.msra.mxu0 %v586
  %638 = vmatprep.subr.mxu0 0.0
  %639 = vmatpush1.msra.mxu0 %v585
  %640 = vmatprep.subr.mxu0 0.0
  %641 = vmatpush2.msra.mxu0 0.0
  %642 = vmatprep.subr.mxu0 0.0
  %643 = vmatpush2.msra.mxu0 0.0
  %644 = vmatprep.subr.mxu0 0.0
  %645 = vmatpush2.msra.mxu0 0.0
  %646 = vmatprep.subr.mxu0 0.0
  %647 = vmatpush2.msra.mxu0 0.0
  %648 = vmatprep.subr.mxu0 0.0
  %649 = vmatpush2.msra.mxu0 0.0
  %650 = vmatprep.subr.mxu0 0.0
  %651 = vmatpush2.msra.mxu0 0.0
  %652 = vmatprep.subr.mxu0 0.0
  %653 = vmatpush2.msra.mxu0 0.0
  %654 = vmatprep.subr.mxu0 0.0
  %655 = vmatpush2.msra.mxu0 0.0
  %656 = vmatprep.subr.mxu0 0.0
  %657 = vmatpush2.msra.mxu0 0.0
  %658 = vmatprep.subr.mxu0 0.0
  %659 = vmatpush2.msra.mxu0 0.0
  %660 = vmatprep.subr.mxu0 0.0
  %661 = vmatpush2.msra.mxu0 0.0
  %662 = vmatprep.subr.mxu0 0.0
  %663 = vmatpush2.msra.mxu0 0.0
  %664 = vmatprep.subr.mxu0 0.0
  %665 = vmatpush2.msra.mxu0 0.0
  %666 = vmatprep.subr.mxu0 0.0
  %667 = vmatpush2.msra.mxu0 0.0
  %668 = vmatprep.subr.mxu0 0.0
  %669 = vmatpush2.msra.mxu0 0.0
  %670 = vmatprep.subr.mxu0 0.0
  %671 = vmatpush2.msra.mxu0 0.0
  %672 = vmatprep.mubr.f32.mxu0 0.0
  %673 = vmatmul.mubr.f32.gmra.mxu0 %v584
  %v674 = vpop.f32.mrf.mxu0
  %v675 = vadd.f32 %v606, %v674
  %v676 = vpop.f32.mrf.mxu0
  %677 = vdwg.mxu0
  %v678 = vmin.f32 %v675, 0.0
  %v679 = vmul.f32 %v678, 1.442695
  %v680 = vpow.pop %v679
  %vm681 = vcmp.gt.f32.partialorder %v675, 0.0
  %v682 = vsub.f32 %v680, 1.0
  %v683 = vsel %vm681, %v675, %v682
  %v684 = vld [vmem:[%s11] sm:$0xff]
  %v685 = vld [vmem:[%s11 + $0x8] sm:$0xff]
  %v686 = vld [vmem:[%s11 + $0x10] sm:$0xff]
  %v687 = vld [vmem:[%s11 + $0x18] sm:$0xff]
  %v688 = vld [vmem:[%s11 + $0x20] sm:$0xff]
  %v689 = vld [vmem:[%s11 + $0x28] sm:$0xff]
  %v690 = vld [vmem:[%s11 + $0x30] sm:$0xff]
  %v691 = vld [vmem:[%s11 + $0x38] sm:$0xff]
  %v692 = vld [vmem:[%s11 + $0x40] sm:$0xff]
  %v693 = vld [vmem:[%s11 + $0x48] sm:$0xff]
  %v694 = vld [vmem:[%s11 + $0x50] sm:$0xff]
  %v695 = vld [vmem:[%s11 + $0x58] sm:$0xff]
  %v696 = vld [vmem:[%s11 + $0x60] sm:$0xff]
  %v697 = vld [vmem:[%s11 + $0x68] sm:$0xff]
  %v698 = vld [vmem:[%s11 + $0x70] sm:$0xff]
  %v699 = vld [vmem:[%s11 + $0x78] sm:$0xff]
  %v700 = vld [vmem:[%s12] sm:$0x1]
  %v702 = vlaneseq
  %v703 = vshrl.u32 %v702, 7
  %v704 = vsub.s32 0, %v703
  %v705 = vrot.slane %v700, %v704
  %707 = vmatprep.subr.mxu0 0.0
  %708 = vmatpush1.msra.mxu0 %v699
  %709 = vmatprep.subr.mxu0 0.0
  %710 = vmatpush1.msra.mxu0 %v698
  %711 = vmatprep.subr.mxu0 0.0
  %712 = vmatpush1.msra.mxu0 %v697
  %713 = vmatprep.subr.mxu0 0.0
  %714 = vmatpush1.msra.mxu0 %v696
  %715 = vmatprep.subr.mxu0 0.0
  %716 = vmatpush1.msra.mxu0 %v695
  %717 = vmatprep.subr.mxu0 0.0
  %718 = vmatpush1.msra.mxu0 %v694
  %719 = vmatprep.subr.mxu0 0.0
  %720 = vmatpush1.msra.mxu0 %v693
  %721 = vmatprep.subr.mxu0 0.0
  %722 = vmatpush1.msra.mxu0 %v692
  %723 = vmatprep.subr.mxu0 0.0
  %724 = vmatpush1.msra.mxu0 %v691
  %725 = vmatprep.subr.mxu0 0.0
  %726 = vmatpush1.msra.mxu0 %v690
  %727 = vmatprep.subr.mxu0 0.0
  %728 = vmatpush1.msra.mxu0 %v689
  %729 = vmatprep.subr.mxu0 0.0
  %730 = vmatpush1.msra.mxu0 %v688
  %731 = vmatprep.subr.mxu0 0.0
  %732 = vmatpush1.msra.mxu0 %v687
  %733 = vmatprep.subr.mxu0 0.0
  %734 = vmatpush1.msra.mxu0 %v686
  %735 = vmatprep.subr.mxu0 0.0
  %736 = vmatpush1.msra.mxu0 %v685
  %737 = vmatprep.subr.mxu0 0.0
  %738 = vmatpush1.msra.mxu0 %v684
  %739 = vmatprep.subr.mxu0 0.0
  %740 = vmatpush2.msra.mxu0 0.0
  %741 = vmatprep.subr.mxu0 0.0
  %742 = vmatpush2.msra.mxu0 0.0
  %743 = vmatprep.subr.mxu0 0.0
  %744 = vmatpush2.msra.mxu0 0.0
  %745 = vmatprep.subr.mxu0 0.0
  %746 = vmatpush2.msra.mxu0 0.0
  %747 = vmatprep.subr.mxu0 0.0
  %748 = vmatpush2.msra.mxu0 0.0
  %749 = vmatprep.subr.mxu0 0.0
  %750 = vmatpush2.msra.mxu0 0.0
  %751 = vmatprep.subr.mxu0 0.0
  %752 = vmatpush2.msra.mxu0 0.0
  %753 = vmatprep.subr.mxu0 0.0
  %754 = vmatpush2.msra.mxu0 0.0
  %755 = vmatprep.subr.mxu0 0.0
  %756 = vmatpush2.msra.mxu0 0.0
  %757 = vmatprep.subr.mxu0 0.0
  %758 = vmatpush2.msra.mxu0 0.0
  %759 = vmatprep.subr.mxu0 0.0
  %760 = vmatpush2.msra.mxu0 0.0
  %761 = vmatprep.subr.mxu0 0.0
  %762 = vmatpush2.msra.mxu0 0.0
  %763 = vmatprep.subr.mxu0 0.0
  %764 = vmatpush2.msra.mxu0 0.0
  %765 = vmatprep.subr.mxu0 0.0
  %766 = vmatpush2.msra.mxu0 0.0
  %767 = vmatprep.subr.mxu0 0.0
  %768 = vmatpush2.msra.mxu0 0.0
  %769 = vmatprep.subr.mxu0 0.0
  %770 = vmatpush2.msra.mxu0 0.0
  %771 = vmatprep.mubr.f32.mxu0 0.0
  %772 = vmatmul.mubr.f32.gmra.mxu0 %v683
  %v773 = vpop.f32.mrf.mxu0
  %v774 = vadd.f32 %v705, %v773
  %v775 = vpop.f32.mrf.mxu0
  %776 = vdwg.mxu0
  %vm777 = vcmask 64512
  %778 = vst.msk [vmem:[%s13] sm:$0xff] %vm777, %v774
  // Predicated region
  $region54: #{_forward_impl.1} parent=0 // pred_check
    _
  $region55: #{_forward_impl.1} parent=0 // pred_check_branch
    %780 = sbr.rel (0) target = $region57
  $region56: #{_forward_impl.1} parent=0 // pred_region
    _
  $region57: #{_forward_impl.1} parent=0 // pred_fallthru
    _
  // Predicated region
  $region58: #{_forward_impl.1} parent=0 // pred_check
    _
  $region59: #{_forward_impl.1} parent=0 // pred_check_branch
    %782 = sbr.rel (0) target = $region61
  $region60: #{_forward_impl.1} parent=0 // pred_region
    _
  $region61: #{_forward_impl.1} parent=0 // pred_fallthru
    _

</llo_original>
